<compile_context>
chip_gen: v7x
topology: tpu7x:2x2x1
jax: 0.10.0
libtpu: 0.0.40
codegen_flags: <defaults>
</compile_context>

<pallas_src>
import functools

import jax
import jax.numpy as jnp
import numpy as np
from jax import lax
from jax.experimental import pallas as pl
from jax.experimental.pallas import tpu as pltpu


def _focal_pow(base, gamma):
    """base**gamma specialized: VPU multiplies for small integer gamma,
    jnp.power (EUP transcendentals) only for non-integer exponents."""
    g = float(gamma)
    if g == 0.0:
        return jnp.ones_like(base)
    if g.is_integer() and 1.0 <= g <= 8.0:
        out = base
        for _ in range(int(g) - 1):
            out = out * base
        return out
    return base ** g


def _focal_ce_kernel(*refs, gamma, label_smoothing, n_valid, num_inner,
                     block_n, use_alpha):
    if use_alpha:
        x_ref, t_ref, alpha_ref, out_ref, acc_ref = refs
    else:
        x_ref, t_ref, out_ref, acc_ref = refs

    g_idx = pl.program_id(0)      # parallel (core-split) axis
    t_idx = pl.program_id(1)      # arbitrary (reduction) axis

    @pl.when(t_idx == 0)
    def _():
        acc_ref[...] = jnp.zeros_like(acc_ref)

    x = x_ref[...].astype(jnp.float32)        # (block_n, C) logits
    t = t_ref[...].astype(jnp.float32)        # (block_n, C) target probs
    tn, num_classes = x.shape

    # --- cross entropy with soft targets + label smoothing ------------------
    m = jnp.max(x, axis=1, keepdims=True)                               # (tn,1)
    lse = m + jnp.log(jnp.sum(jnp.exp(x - m), axis=1, keepdims=True))   # (tn,1)
    t_s = t * (1.0 - label_smoothing) + label_smoothing / num_classes
    # -sum_c t_s * log_softmax(x) = lse - sum_c t_s*x  (rows of t_s sum to 1)
    minus_logpt = lse - jnp.sum(t_s * x, axis=1, keepdims=True)         # (tn,1)

    # --- focal modulation ----------------------------------------------------
    pt = jnp.exp(-minus_logpt)
    one_minus_pt = jnp.maximum(1.0 - pt, 0.0)   # avoid NaN when pt rounds > 1
    focal = _focal_pow(one_minus_pt, gamma) * minus_logpt               # (tn,1)

    if use_alpha:
        # alpha[target.argmax(1)] (first-max tie-break), gather-free.
        iota_c = lax.broadcasted_iota(jnp.int32, (tn, num_classes), 1)
        tmax = jnp.max(t, axis=1, keepdims=True)
        idx = jnp.min(jnp.where(t == tmax, iota_c, num_classes),
                      axis=1, keepdims=True)                            # (tn,1)
        alpha = alpha_ref[...].astype(jnp.float32)                      # (1, C)
        alpha_row = jnp.sum(jnp.where(iota_c == idx, alpha, 0.0),
                            axis=1, keepdims=True)                      # (tn,1)
        focal = focal * alpha_row

    # Mask rows past N: covers (a) the ragged tail of the last partial tile
    # (Pallas edge block; padded sublanes hold unspecified data) and (b) fully
    # out-of-range tiles whose index_map was clamped to the last valid block.
    row0 = (g_idx * num_inner + t_idx) * block_n
    rows = row0 + lax.broadcasted_iota(jnp.int32, (tn, 1), 0)
    focal = jnp.where(rows < n_valid, focal, 0.0)

    # Pure-VPU vector accumulation; single cross-sublane reduce in epilogue.
    acc_ref[...] += focal

    @pl.when(t_idx == num_inner - 1)
    def _():
        partial = jnp.sum(acc_ref[...], keepdims=True)                  # (1,1)
        out_ref[...] = jnp.broadcast_to(partial, out_ref.shape)


def focal_ce_loss(inputs, target, alpha=None, gamma=2.0,
                  reduction="mean", label_smoothing=0.0,
                  block_n=None, num_cores=2):
    """Pallas implementation of FocalCELoss.forward (reduction in {'mean','sum'})."""
    N, C = inputs.shape
    assert target.shape == (N, C)
    assert reduction in ("mean", "sum")

    # Row-tile sizing: largest tile (<= 2048 rows) that keeps the
    # double-buffered input windows around ~24 MiB, with headroom under the
    # 48 MiB scoped-VMEM limit (safe on v5e / v6e / v7x).
    if block_n is None:
        per_row = 2 * C * (jnp.dtype(inputs.dtype).itemsize +
                           jnp.dtype(target.dtype).itemsize)  # 2 = double buffer
        block_n = int(min(2048, max(8, (24 * 1024 * 1024) // per_row)))
    block_n = min(int(block_n), N)
    block_n = max(8, (block_n // 8) * 8)

    num_blocks = int(pl.cdiv(N, block_n))
    grid_g = int(min(num_cores, num_blocks))     # parallel (megacore) split
    num_inner = int(pl.cdiv(num_blocks, grid_g))

    def row_block(g, t):
        # Clamp so fully-out-of-range tiles re-read the last valid block;
        # their rows are masked out inside the kernel.
        return jnp.minimum(g * num_inner + t, num_blocks - 1)

    use_alpha = alpha is not None
    in_arrays = [inputs, target]
    in_specs = [pl.BlockSpec((block_n, C), lambda g, t: (row_block(g, t), 0)),
                pl.BlockSpec((block_n, C), lambda g, t: (row_block(g, t), 0))]
    if use_alpha:
        in_arrays.append(jnp.asarray(alpha, jnp.float32).reshape(1, C))
        in_specs.append(pl.BlockSpec((1, C), lambda g, t: (0, 0)))

    kernel = functools.partial(
        _focal_ce_kernel,
        gamma=float(gamma),
        label_smoothing=float(label_smoothing),
        n_valid=N,
        num_inner=num_inner,
        block_n=block_n,
        use_alpha=use_alpha,
    )

    partials = pl.pallas_call(
        kernel,
        out_shape=jax.ShapeDtypeStruct((grid_g * 8, 128), jnp.float32),
        grid_spec=pltpu.PrefetchScalarGridSpec(
            num_scalar_prefetch=0,
            grid=(grid_g, num_inner),
            in_specs=in_specs,
            out_specs=pl.BlockSpec((8, 128), lambda g, t: (g, 0)),
            scratch_shapes=[pltpu.VMEM((block_n, 1), jnp.float32)],
        ),
        compiler_params=pltpu.CompilerParams(
            dimension_semantics=("parallel", "arbitrary"),
            vmem_limit_bytes=48 * 1024 * 1024,
        ),
    )(*in_arrays)

    total = jnp.sum(partials.reshape(grid_g, 8, 128)[:, 0, 0])
    return total / N if reduction == "mean" else total


def _reference(inputs, target, alpha, gamma, reduction, label_smoothing):
    inputs = inputs.astype(jnp.float32)
    target = target.astype(jnp.float32)
    _, C = inputs.shape
    logp = jax.nn.log_softmax(inputs, axis=1)
    t_s = target * (1.0 - label_smoothing) + label_smoothing / C
    minus_logpt = -jnp.sum(t_s * logp, axis=1)
    pt = jnp.exp(-minus_logpt)
    focal = (1.0 - pt) ** gamma * minus_logpt
    if alpha is not None:
        focal = focal * alpha[jnp.argmax(target, axis=1)]
    return jnp.mean(focal) if reduction == "mean" else jnp.sum(focal)


if __name__ == "__main__":
    key = jax.random.PRNGKey(0)
    k1, k2, k3, k4 = jax.random.split(key, 4)

    # Case 1: f32 inputs, class weights (alpha), gamma=2, reduction='mean'.
    N, C = 16, 32
    logits = jax.random.normal(k1, (N, C), jnp.float32)
    labels = jax.random.randint(k2, (N,), 0, C)
    target = jax.nn.one_hot(labels, C, dtype=jnp.float32)
    alpha = jnp.linspace(0.5, 1.5, C).astype(jnp.float32)

    loss = focal_ce_loss(logits, target, alpha=alpha, gamma=2.0,
                         reduction="mean", label_smoothing=0.0)
    jax.block_until_ready(loss)
    ref = _reference(logits, target, alpha, 2.0, "mean", 0.0)
    np.testing.assert_allclose(np.asarray(loss), np.asarray(ref),
                               rtol=1e-5, atol=1e-5)

    # Case 2: bf16 inputs, no alpha, ragged N (masked), label smoothing, 'sum'.
    N2, C2 = 12, 32
    logits2 = jax.random.normal(k3, (N2, C2), jnp.float32)
    labels2 = jax.random.randint(k4, (N2,), 0, C2)
    target2 = jax.nn.one_hot(labels2, C2, dtype=jnp.float32)
    loss2 = focal_ce_loss(logits2.astype(jnp.bfloat16),
                          target2.astype(jnp.bfloat16),
                          alpha=None, gamma=2.0,
                          reduction="sum", label_smoothing=0.1)
    jax.block_until_ready(loss2)
    ref2 = _reference(logits2.astype(jnp.bfloat16), target2.astype(jnp.bfloat16),
                      None, 2.0, "sum", 0.1)
    np.testing.assert_allclose(np.asarray(loss2), np.asarray(ref2),
                               rtol=1e-4, atol=1e-4)

    print("KERNEL_OK")
</pallas_src>

<mosaic_0001>
module attributes {stable_mosaic.version = 11 : i64} {
  func.func @_focal_ce_kernel(%arg0: i32, %arg1: i32, %arg2: memref<16x32xf32, #tpu.memory_space<vmem>>, %arg3: memref<16x32xf32, #tpu.memory_space<vmem>>, %arg4: memref<1x32xf32, #tpu.memory_space<vmem>>, %arg5: memref<8x128xf32, #tpu.memory_space<vmem>>, %arg6: memref<16x1xf32, #tpu.memory_space<vmem>>) attributes {dimension_semantics = [#tpu.dimension_semantics<parallel>, #tpu.dimension_semantics<arbitrary>], iteration_bounds = array<i64: 1, 1>, scalar_prefetch = 0 : i64, scratch_operands = 1 : i64, tpu.core_type = #tpu.core_type<tc>, window_params = [{transform_indices = @transform_0, window_bounds = array<i64: 16, 32>}, {transform_indices = @transform_1, window_bounds = array<i64: 16, 32>}, {pipeline_mode = #tpu.pipeline_mode<synchronous>, transform_indices = @transform_2, window_bounds = array<i64: 1, 32>}, {transform_indices = @transform_3, window_bounds = array<i64: 8, 128>}]} {
    %c0_i32 = arith.constant 0 : i32
    %0 = arith.cmpi eq, %arg1, %c0_i32 : i32
    %1 = arith.extui %0 : i1 to i32
    %c0_i32_0 = arith.constant 0 : i32
    %2 = arith.cmpi ne, %1, %c0_i32_0 : i32
    scf.if %2 {
      %cst_25 = arith.constant 0.000000e+00 : f32
      %66 = vector.broadcast %cst_25 : f32 to vector<16x1xf32>
      %c0_26 = arith.constant 0 : index
      %c0_27 = arith.constant 0 : index
      %67 = vector.load %arg6[%c0_26, %c0_27] : memref<16x1xf32, #tpu.memory_space<vmem>>, vector<16x1xf32>
      tpu.vector_store %arg6[%c0_26, %c0_27], %66 {strides = array<i32>} : memref<16x1xf32, #tpu.memory_space<vmem>>, vector<16x1xf32>,
    } else {
    }
    %c0 = arith.constant 0 : index
    %c0_1 = arith.constant 0 : index
    %3 = vector.load %arg2[%c0, %c0_1] : memref<16x32xf32, #tpu.memory_space<vmem>>, vector<16x32xf32>
    %c0_2 = arith.constant 0 : index
    %c0_3 = arith.constant 0 : index
    %4 = vector.load %arg3[%c0_2, %c0_3] : memref<16x32xf32, #tpu.memory_space<vmem>>, vector<16x32xf32>
    %cst = arith.constant dense<0xFF800000> : vector<16xf32>
    %5 = vector.multi_reduction <maximumf>, %3, %cst [1] : vector<16x32xf32> to vector<16xf32>
    %6 = vector.shape_cast %5 : vector<16xf32> to vector<16x1xf32>
    %7 = vector.broadcast %6 : vector<16x1xf32> to vector<16x32xf32>
    %8 = arith.subf %3, %7 : vector<16x32xf32>
    %9 = math.exp %8 : vector<16x32xf32>
    %cst_4 = arith.constant dense<0.000000e+00> : vector<16xf32>
    %10 = vector.multi_reduction <add>, %9, %cst_4 [1] : vector<16x32xf32> to vector<16xf32>
    %11 = vector.shape_cast %10 : vector<16xf32> to vector<16x1xf32>
    %12 = math.log %11 : vector<16x1xf32>
    %13 = arith.addf %6, %12 : vector<16x1xf32>
    %cst_5 = arith.constant 1.000000e+00 : f32
    %14 = vector.broadcast %cst_5 : f32 to vector<16x32xf32>
    %15 = arith.mulf %4, %14 : vector<16x32xf32>
    %cst_6 = arith.constant 0.000000e+00 : f32
    %16 = vector.broadcast %cst_6 : f32 to vector<16x32xf32>
    %17 = arith.addf %15, %16 : vector<16x32xf32>
    %18 = arith.mulf %17, %3 : vector<16x32xf32>
    %cst_7 = arith.constant dense<0.000000e+00> : vector<16xf32>
    %19 = vector.multi_reduction <add>, %18, %cst_7 [1] : vector<16x32xf32> to vector<16xf32>
    %20 = vector.shape_cast %19 : vector<16xf32> to vector<16x1xf32>
    %21 = arith.subf %13, %20 : vector<16x1xf32>
    %cst_8 = arith.constant 0.000000e+00 : f32
    %22 = vector.broadcast %cst_8 : f32 to vector<16x1xf32>
    %23 = arith.subf %22, %21 : vector<16x1xf32>
    %24 = math.exp %23 : vector<16x1xf32>
    %cst_9 = arith.constant 1.000000e+00 : f32
    %25 = vector.broadcast %cst_9 : f32 to vector<16x1xf32>
    %26 = arith.subf %25, %24 : vector<16x1xf32>
    %cst_10 = arith.constant 0.000000e+00 : f32
    %27 = vector.broadcast %cst_10 : f32 to vector<16x1xf32>
    %28 = arith.maximumf %26, %27 : vector<16x1xf32>
    %29 = arith.mulf %28, %28 : vector<16x1xf32>
    %30 = arith.mulf %29, %21 : vector<16x1xf32>
    %31 = tpu.iota {dimensions = array<i32: 1>} : vector<16x32xi32>
    %cst_11 = arith.constant dense<0xFF800000> : vector<16xf32>
    %32 = vector.multi_reduction <maximumf>, %4, %cst_11 [1] : vector<16x32xf32> to vector<16xf32>
    %33 = vector.shape_cast %32 : vector<16xf32> to vector<16x1xf32>
    %34 = vector.broadcast %33 : vector<16x1xf32> to vector<16x32xf32>
    %35 = arith.cmpf oeq, %4, %34 : vector<16x32xf32>
    %c32_i32 = arith.constant 32 : i32
    %36 = vector.broadcast %c32_i32 : i32 to vector<16x32xi32>
    %37 = arith.select %35, %31, %36 : vector<16x32xi1>, vector<16x32xi32>
    %cst_12 = arith.constant dense<2147483647> : vector<16xi32>
    %38 = vector.multi_reduction <minsi>, %37, %cst_12 [1] : vector<16x32xi32> to vector<16xi32>
    %39 = vector.shape_cast %38 : vector<16xi32> to vector<16x1xi32>
    %c0_13 = arith.constant 0 : index
    %c0_14 = arith.constant 0 : index
    %40 = vector.load %arg4[%c0_13, %c0_14] : memref<1x32xf32, #tpu.memory_space<vmem>>, vector<1x32xf32>
    %41 = vector.broadcast %39 : vector<16x1xi32> to vector<16x32xi32>
    %42 = arith.cmpi eq, %31, %41 : vector<16x32xi32>
    %cst_15 = arith.constant 0.000000e+00 : f32
    %43 = vector.shape_cast %40 : vector<1x32xf32> to vector<1x32xf32>
    %44 = vector.broadcast %43 : vector<1x32xf32> to vector<16x32xf32>
    %45 = vector.broadcast %cst_15 : f32 to vector<16x32xf32>
    %46 = arith.select %42, %44, %45 : vector<16x32xi1>, vector<16x32xf32>
    %cst_16 = arith.constant dense<0.000000e+00> : vector<16xf32>
    %47 = vector.multi_reduction <add>, %46, %cst_16 [1] : vector<16x32xf32> to vector<16xf32>
    %48 = vector.shape_cast %47 : vector<16xf32> to vector<16x1xf32>
    %49 = arith.mulf %30, %48 : vector<16x1xf32>
    %c1_i32 = arith.constant 1 : i32
    %50 = arith.muli %arg0, %c1_i32 : i32
    %51 = arith.addi %50, %arg1 : i32
    %c16_i32 = arith.constant 16 : i32
    %52 = arith.muli %51, %c16_i32 : i32
    %53 = tpu.iota {dimensions = array<i32: 0>} : vector<16x1xi32>
    %54 = vector.broadcast %52 : i32 to vector<16x1xi32>
    %55 = arith.addi %54, %53 : vector<16x1xi32>
    %c16_i32_17 = arith.constant 16 : i32
    %56 = vector.broadcast %c16_i32_17 : i32 to vector<16x1xi32>
    %57 = arith.cmpi slt, %55, %56 : vector<16x1xi32>
    %cst_18 = arith.constant 0.000000e+00 : f32
    %58 = vector.broadcast %cst_18 : f32 to vector<16x1xf32>
    %59 = arith.select %57, %49, %58 : vector<16x1xi1>, vector<16x1xf32>
    %c0_19 = arith.constant 0 : index
    %c0_20 = arith.constant 0 : index
    %60 = vector.load %arg6[%c0_19, %c0_20] : memref<16x1xf32, #tpu.memory_space<vmem>>, vector<16x1xf32>
    %61 = arith.addf %60, %59 : vector<16x1xf32>
    %c0_21 = arith.constant 0 : index
    %c0_22 = arith.constant 0 : index
    %62 = vector.load %arg6[%c0_21, %c0_22] : memref<16x1xf32, #tpu.memory_space<vmem>>, vector<16x1xf32>
    tpu.vector_store %arg6[%c0_21, %c0_22], %61 {strides = array<i32>} : memref<16x1xf32, #tpu.memory_space<vmem>>, vector<16x1xf32>,
    %c0_i32_23 = arith.constant 0 : i32
    %63 = arith.cmpi eq, %arg1, %c0_i32_23 : i32
    %64 = arith.extui %63 : i1 to i32
    %c0_i32_24 = arith.constant 0 : i32
    %65 = arith.cmpi ne, %64, %c0_i32_24 : i32
    scf.if %65 {
      %c0_25 = arith.constant 0 : index
      %c0_26 = arith.constant 0 : index
      %66 = vector.load %arg6[%c0_25, %c0_26] : memref<16x1xf32, #tpu.memory_space<vmem>>, vector<16x1xf32>
      %67 = vector.shape_cast %66 : vector<16x1xf32> to vector<1x16x1xf32>
      %cst_27 = arith.constant dense<0.000000e+00> : vector<1xf32>
      %68 = vector.multi_reduction <add>, %67, %cst_27 [1, 2] : vector<1x16x1xf32> to vector<1xf32>
      %69 = vector.shape_cast %68 : vector<1xf32> to vector<1x1x1xf32>
      %70 = vector.extract %69[0, 0, 0] : f32 from vector<1x1x1xf32>
      %71 = vector.broadcast %70 : f32 to vector<1x1xf32>
      %72 = vector.shape_cast %71 : vector<1x1xf32> to vector<1x1xf32>
      %73 = vector.broadcast %72 : vector<1x1xf32> to vector<8x128xf32>
      %c0_28 = arith.constant 0 : index
      %c0_29 = arith.constant 0 : index
      %74 = vector.load %arg5[%c0_28, %c0_29] : memref<8x128xf32, #tpu.memory_space<vmem>>, vector<8x128xf32>
      tpu.vector_store %arg5[%c0_28, %c0_29], %73 {strides = array<i32>} : memref<8x128xf32, #tpu.memory_space<vmem>>, vector<8x128xf32>,
    } else {
    }
    return
  }
  func.func @transform_0(%arg0: i32, %arg1: i32) -> (i32, i32) {
    %c1_i32 = arith.constant 1 : i32
    %0 = arith.muli %arg0, %c1_i32 : i32
    %1 = arith.addi %0, %arg1 : i32
    %c0_i32 = arith.constant 0 : i32
    %2 = arith.minsi %1, %c0_i32 : i32
    %c0_i32_0 = arith.constant 0 : i32
    %c0_i32_1 = arith.constant 0 : i32
    return %2, %c0_i32_0 : i32, i32
  }
  func.func @transform_1(%arg0: i32, %arg1: i32) -> (i32, i32) {
    %c1_i32 = arith.constant 1 : i32
    %0 = arith.muli %arg0, %c1_i32 : i32
    %1 = arith.addi %0, %arg1 : i32
    %c0_i32 = arith.constant 0 : i32
    %2 = arith.minsi %1, %c0_i32 : i32
    %c0_i32_0 = arith.constant 0 : i32
    %c0_i32_1 = arith.constant 0 : i32
    return %2, %c0_i32_0 : i32, i32
  }
  func.func @transform_2(%arg0: i32, %arg1: i32) -> (i32, i32) {
    %c0_i32 = arith.constant 0 : i32
    %c0_i32_0 = arith.constant 0 : i32
    %c0_i32_1 = arith.constant 0 : i32
    return %c0_i32, %c0_i32_0 : i32, i32
  }
  func.func @transform_3(%arg0: i32, %arg1: i32) -> (i32, i32) {
    %c0_i32 = arith.constant 0 : i32
    %c0_i32_0 = arith.constant 0 : i32
    return %arg0, %c0_i32 : i32, i32
  }
}

</mosaic_0001>

<llo_original>
// kernel: tpu_custom_call.1
$region0: #{tpu_custom_call.1}
  #allocation0 [shape = 'u32[]', space=smem, size = 0x4, offset = 0x4, fixed_abs, tag = 'smem constant byte address 0x4 - core index']
  #allocation1 [shape = 'u32[144,128]{1,0:T(1,128)}', space=vmem, size = 0x12000, scoped, tag = 'internal scratch']
  #allocation2 [shape = 'f32[16,1]{1,0:T(8,128)}', space=vmem, size = 0x2000, scoped, tag = 'scratch operand']
  %s0 = inlined_call_operand.hbm [shape: f32[16,32], index: 0, kind: input, shape index: {}]
  %s1 = inlined_call_operand.hbm [shape: f32[16,32], index: 1, kind: input, shape index: {}]
  %s2 = inlined_call_operand.vmem [shape: f32[1,32], index: 2, kind: input, shape index: {}]
  %s3 = inlined_call_operand.hbm [shape: f32[8,128], index: 3, kind: output, shape index: {}]
  %s4 = sld [smem:[#allocation0]]
  $region38: #{tpu_custom_call.1} parent=0
    _
  %s6 = ssub.s32 1, %s4
  %s7 = scalar_select 0, %s6, %s4
  $region1: #{tpu_custom_call.1} parent=0
    #allocation3 [shape = 'u8[8192]{0}', space=vmem, size = 0x2000, scoped, tag = 'input window, operand 0, single buffered']
    #allocation4 [shape = 's32[1]{0}', space=sflag, size = 0x4, scoped, tag = 'scoped memory for tpu_custom_call.1']
    #allocation5 [shape = 's32[1]{0}', space=sflag, size = 0x4, scoped, tag = 'scoped memory for tpu_custom_call.1']
    #allocation6 [shape = 'u8[8192]{0}', space=vmem, size = 0x2000, scoped, tag = 'input window, operand 1, single buffered']
    #allocation7 [shape = 's32[1]{0}', space=sflag, size = 0x4, scoped, tag = 'scoped memory for tpu_custom_call.1']
    #allocation8 [shape = 'u8[4096]{0}', space=vmem, size = 0x1000, scoped, tag = 'output window, operand 0, single buffered']
    %8 = vsyncpa [#allocation4], 0
    %9 = vsyncpa [#allocation7], 0
    %10 = vsyncpa [#allocation5], 0
    // Predicated region
    $region2: #{tpu_custom_call.1} parent=1 // pred_check
      _
    $region3: #{tpu_custom_call.1} parent=1 // pred_check_branch
      %12 = sbr.rel (0) target = $region5
    $region4: #{tpu_custom_call.1} parent=1 // pred_region
      %s13 = sadd.s32 0, 0
      %p14 = scmp.lt.s32.totalorder %s13, 0
      %s15 = scalar_select %p14, %s13, 0
      %s16 = smul.u32 2, %s15
      %s18 = ssub.s32 256, 256
      %19 = vsyncadd [#allocation4], %s18
      %s20 = smul.addr %s16, 128
      %s21 = scalar_lea.hbm %s0, %s20
      %s22 = sshll.u32 [#allocation3], 4
      %s23 = int_to_ptr.vmem [resolvable:$true] %s22
      %28 = dma.hbm_to_vmem [thread:$0]  %s21, 256, %s23, [#allocation4], 128, 128, 8
    $region5: #{tpu_custom_call.1} parent=1 // pred_fallthru
      _
    // Predicated region
    $region6: #{tpu_custom_call.1} parent=1 // pred_check
      _
    $region7: #{tpu_custom_call.1} parent=1 // pred_check_branch
      %30 = sbr.rel (0) target = $region9
    $region8: #{tpu_custom_call.1} parent=1 // pred_region
      %s31 = sadd.s32 0, 0
      %p32 = scmp.lt.s32.totalorder %s31, 0
      %s33 = scalar_select %p32, %s31, 0
      %s34 = smul.u32 2, %s33
      %s36 = ssub.s32 256, 256
      %37 = vsyncadd [#allocation7], %s36
      %s38 = smul.addr %s34, 128
      %s39 = scalar_lea.hbm %s1, %s38
      %s40 = sshll.u32 [#allocation6], 4
      %s41 = int_to_ptr.vmem [resolvable:$true] %s40
      %46 = dma.hbm_to_vmem [thread:$0]  %s39, 256, %s41, [#allocation7], 128, 128, 8
    $region9: #{tpu_custom_call.1} parent=1 // pred_fallthru
      _
    // Predicated region
    $region10: #{tpu_custom_call.1} parent=1 // pred_check
      _
    $region11: #{tpu_custom_call.1} parent=1 // pred_check_branch
      %48 = sbr.rel (0) target = $region13
    $region12: #{tpu_custom_call.1} parent=1 // pred_region
      _
    $region13: #{tpu_custom_call.1} parent=1 // pred_fallthru
      _
    // Predicated region
    $region14: #{tpu_custom_call.1} parent=1 // pred_check
      _
    $region15: #{tpu_custom_call.1} parent=1 // pred_check_branch
      %50 = sbr.rel (0) target = $region17
    $region16: #{tpu_custom_call.1} parent=1 // pred_region
      %51 = dma.done [#allocation4], 256
    $region17: #{tpu_custom_call.1} parent=1 // pred_fallthru
      _
    // Predicated region
    $region18: #{tpu_custom_call.1} parent=1 // pred_check
      _
    $region19: #{tpu_custom_call.1} parent=1 // pred_check_branch
      %53 = sbr.rel (0) target = $region21
    $region20: #{tpu_custom_call.1} parent=1 // pred_region
      %54 = dma.done [#allocation7], 256
    $region21: #{tpu_custom_call.1} parent=1 // pred_fallthru
      _
    %s55 = sadd.s32 0, 0
    %p56 = scmp.lt.s32.totalorder %s55, 0
    %s57 = scalar_select %p56, %s55, 0
    %s58 = smul.u32 2, %s57
    %s59 = sadd.s32 0, 0
    %p60 = scmp.lt.s32.totalorder %s59, 0
    %s61 = scalar_select %p60, %s59, 0
    %s62 = smul.u32 2, %s61
    %p63 = scmp.eq.s32.totalorder 0, 0
    // Predicated region
    $region22: #{tpu_custom_call.1} parent=1 // pred_check
      %p64 = pneg %p63
    $region23: #{tpu_custom_call.1} parent=1 // pred_check_branch
      %66 = sbr.rel (%p64) target = $region25
    $region24: #{tpu_custom_call.1} parent=1 // pred_region
      %vm67 = vcmask 7168
      %68 = vst.msk [vmem:[#allocation2] sm:$0xff] %vm67, 0.0
      %69 = vst.msk [vmem:[#allocation2 + $0x8] sm:$0xff] %vm67, 0.0
    $region25: #{tpu_custom_call.1} parent=1 // pred_fallthru
      _
    %v70 = vld [vmem:[#allocation3] sm:$0xff]
    %v71 = vld [vmem:[#allocation3 + $0x8] sm:$0xff]
    %v72 = vld [vmem:[#allocation6] sm:$0xff]
    %v73 = vld [vmem:[#allocation6 + $0x8] sm:$0xff]
    %vm74 = vcmask 261120
    %v75 = vsel %vm74, %v70, -inf
    %76 = vmax.xlane.f32.xlu0 %v75
    %v77 = vpop.xlane.xlu0 %76
    %v78 = vsel %vm74, %v71, -inf
    %79 = vmax.xlane.f32.xlu0 %v78
    %v80 = vpop.xlane.xlu0 %79
    %v81 = vsub.f32 %v70, %v77
    %v82 = vsub.f32 %v71, %v80
    %v83 = vmul.f32 %v81, 1.442695
    %v84 = vpow.pop %v83
    %v85 = vmul.f32 %v82, 1.442695
    %v86 = vpow.pop %v85
    %v87 = vsel %vm74, %v84, 0.0
    %88 = vadd.xlane.f32.xlu0 %v87
    %v89 = vpop.xlane.xlu0 %88
    %v90 = vsel %vm74, %v86, 0.0
    %91 = vadd.xlane.f32.xlu0 %v90
    %v92 = vpop.xlane.xlu0 %91
    %v93 = vlog2.pop %v89
    %v94 = vmul.f32 %v93, 0.6931472
    %v95 = vlog2.pop %v92
    %v96 = vmul.f32 %v95, 0.6931472
    %v97 = vadd.f32 %v77, %v94
    %v98 = vadd.f32 %v80, %v96
    %v99 = vadd.f32 %v72, 0.0
    %v100 = vadd.f32 %v73, 0.0
    %v101 = vmul.f32 %v99, %v70
    %v102 = vmul.f32 %v100, %v71
    %v103 = vsel %vm74, %v101, 0.0
    %104 = vadd.xlane.f32.xlu0 %v103
    %v105 = vpop.xlane.xlu0 %104
    %v106 = vsel %vm74, %v102, 0.0
    %107 = vadd.xlane.f32.xlu0 %v106
    %v108 = vpop.xlane.xlu0 %107
    %v109 = vsub.f32 %v97, %v105
    %v110 = vsub.f32 %v98, %v108
    %v111 = vsub.f32 0.0, %v109
    %v112 = vsub.f32 0.0, %v110
    %v113 = vmul.f32 %v111, 1.442695
    %v114 = vpow.pop %v113
    %v115 = vmul.f32 %v112, 1.442695
    %v116 = vpow.pop %v115
    %v117 = vsub.f32 1.0, %v114
    %v118 = vsub.f32 1.0, %v116
    %v119 = vmax.f32 %v117, 0.0
    %v120 = vmax.f32 %v118, 0.0
    %v121 = vmul.f32 %v119, %v119
    %v122 = vmul.f32 %v120, %v120
    %v123 = vmul.f32 %v121, %v109
    %v124 = vmul.f32 %v122, %v110
    %v125 = vlaneseq
    %v126 = vand.u32 %v125, 127
    %v127 = vsel %vm74, %v72, -inf
    %128 = vmax.xlane.f32.xlu0 %v127
    %v129 = vpop.xlane.xlu0 %128
    %v130 = vsel %vm74, %v73, -inf
    %131 = vmax.xlane.f32.xlu0 %v130
    %v132 = vpop.xlane.xlu0 %131
    %vm133 = vcmp.eq.f32.partialorder %v72, %v129
    %vm134 = vcmp.eq.f32.partialorder %v73, %v132
    %v135 = vsel %vm133, %v126, 32
    %v136 = vsel %vm134, %v126, 32
    %v137 = vsel %vm74, %v135, 2147483647
    %v138 = vand.u32 %v137, 65535
    %v139 = vshra.s32 %v137, 16
    %v140 = vcvt.s32.f32 %v138
    %v141 = vcvt.s32.f32 %v139
    %142 = vmin.xlane.f32.xlu0 %v141
    %v143 = vpop.xlane.xlu0 %142
    %vm144 = vcmp.eq.f32.partialorder %v141, %v143
    %v145 = vsel %vm144, %v140, inf
    %146 = vmin.xlane.f32.xlu0 %v145
    %v147 = vpop.xlane.xlu0 %146
    %v148 = vcvt.f32.s32 %v147
    %v149 = vcvt.f32.s32 %v143
    %v150 = vshll.u32 %v149, 16
    %v151 = vadd.s32 %v150, %v148
    %v152 = vsel %vm74, %v136, 2147483647
    %v153 = vand.u32 %v152, 65535
    %v154 = vshra.s32 %v152, 16
    %v155 = vcvt.s32.f32 %v153
    %v156 = vcvt.s32.f32 %v154
    %157 = vmin.xlane.f32.xlu0 %v156
    %v158 = vpop.xlane.xlu0 %157
    %vm159 = vcmp.eq.f32.partialorder %v156, %v158
    %v160 = vsel %vm159, %v155, inf
    %161 = vmin.xlane.f32.xlu0 %v160
    %v162 = vpop.xlane.xlu0 %161
    %v163 = vcvt.f32.s32 %v162
    %v164 = vcvt.f32.s32 %v158
    %v165 = vshll.u32 %v164, 16
    %v166 = vadd.s32 %v165, %v163
    %v167 = vld [vmem:[%s2] sm:$0x1]
    %vm168 = vcmp.eq.s32.totalorder %v126, %v151
    %vm169 = vcmp.eq.s32.totalorder %v126, %v166
    %v171 = vlaneseq
    %v172 = vshrl.u32 %v171, 7
    %v173 = vsub.s32 0, %v172
    %v174 = vrot.slane %v167, %v173
    %v176 = vsel %vm168, %v174, 0.0
    %v177 = vsel %vm169, %v174, 0.0
    %v178 = vsel %vm74, %v176, 0.0
    %179 = vadd.xlane.f32.xlu0 %v178
    %v180 = vpop.xlane.xlu0 %179
    %v181 = vsel %vm74, %v177, 0.0
    %182 = vadd.xlane.f32.xlu0 %v181
    %v183 = vpop.xlane.xlu0 %182
    %v184 = vmul.f32 %v123, %v180
    %v185 = vmul.f32 %v124, %v183
    %s186 = sadd.s32 0, 0
    %s187 = smul.u32 %s186, 16
    %v188 = vlaneseq
    %v189 = vshrl.u32 %v188, 7
    %v190 = vadd.s32 %v189, 8
    %v191 = vstv %s187
    %v192 = vadd.s32 %v191, %v189
    %v193 = vadd.s32 %v191, %v190
    %vm194 = vcmp.lt.s32.totalorder %v192, 16
    %vm195 = vcmp.lt.s32.totalorder %v193, 16
    %v196 = vsel %vm194, %v184, 0.0
    %v197 = vsel %vm195, %v185, 0.0
    %v198 = vld [vmem:[#allocation2] sm:$0xff]
    %v199 = vld [vmem:[#allocation2 + $0x8] sm:$0xff]
    %v200 = vadd.f32 %v198, %v196
    %v201 = vadd.f32 %v199, %v197
    %vm202 = vcmask 7168
    %203 = vst.msk [vmem:[#allocation2] sm:$0xff] %vm202, %v200
    %204 = vst.msk [vmem:[#allocation2 + $0x8] sm:$0xff] %vm202, %v201
    // Predicated region
    $region26: #{tpu_custom_call.1} parent=1 // pred_check
      %p205 = pneg %p63
    $region27: #{tpu_custom_call.1} parent=1 // pred_check_branch
      %207 = sbr.rel (%p205) target = $region29
    $region28: #{tpu_custom_call.1} parent=1 // pred_region
      %v208 = vld [vmem:[#allocation2] sm:$0xff]
      %v209 = vld [vmem:[#allocation2 + $0x8] sm:$0xff]
      %v210 = vsel %vm202, %v208, 0.0
      %v211 = vsel %vm202, %v209, 0.0
      %v212 = vadd.f32 %v210, %v211
      %213 = vadd.xlane.f32.xlu0 %v212
      %v214 = vpop.xlane.xlu0 %213
      %v215 = vrot.slane %v214, 4
      %v216 = vadd.f32 %v214, %v215
      %v217 = vrot.slane %v216, 2
      %v218 = vadd.f32 %v216, %v217
      %v219 = vrot.slane %v218, 1
      %v220 = vadd.f32 %v218, %v219
      %s221 = vtos %v220
      %v222 = vstv %s221
      %223 = vst [vmem:[#allocation8] sm:$0xff] %v222
    $region29: #{tpu_custom_call.1} parent=1 // pred_fallthru
      _
    // Predicated region
    $region30: #{tpu_custom_call.1} parent=1 // pred_check
      _
    $region31: #{tpu_custom_call.1} parent=1 // pred_check_branch
      %225 = sbr.rel (0) target = $region33
    $region32: #{tpu_custom_call.1} parent=1 // pred_region
      %s227 = ssub.s32 128, 128
      %228 = vsyncadd [#allocation5], %s227
      %s230 = sshll.u32 [#allocation8], 4
      %s231 = int_to_ptr.vmem [resolvable:$true] %s230
      %233 = dma.vmem_to_hbm [thread:$0]  %s231, 128, %s3, [#allocation5]
    $region33: #{tpu_custom_call.1} parent=1 // pred_fallthru
      _
    // Predicated region
    $region34: #{tpu_custom_call.1} parent=1 // pred_check
      _
    $region35: #{tpu_custom_call.1} parent=1 // pred_check_branch
      %235 = sbr.rel (0) target = $region37
    $region36: #{tpu_custom_call.1} parent=1 // pred_region
      %236 = dma.done [#allocation5], 128
    $region37: #{tpu_custom_call.1} parent=1 // pred_fallthru
      _
    %237 = vsyncpa [#allocation4], 1
    %238 = vsyncpa [#allocation7], 1
    %239 = vsyncpa [#allocation5], 1

</llo_original>
